<compile_context>
chip_gen: v5e
topology: v5e:2x2
jax: 0.10.0
libtpu: 0.0.40
codegen_flags: <defaults>
</compile_context>

<pallas_src>
import functools
import math

import jax
import jax.numpy as jnp
from jax import lax
from jax.experimental import pallas as pl
from jax.experimental.pallas import tpu as pltpu


def _gated_xattn_kernel(vis_ref, aud_ref,
                        w_apg_ref, b_apg_ref,
                        w_q_ref, b_q_ref,
                        w_kv_ref, b_kv_ref,
                        w_o_ref, b_o_ref,
                        out_ref,
                        k_cache_ref, v_cache_ref, q_buf_ref, o_buf_ref,
                        *, num_heads, head_dim, hidden_dim, tq, nq_per_split):
    split = pl.program_id(0)
    qi = pl.program_id(2)
    cdt = vis_ref.dtype                       # native compute dtype fed to the MXU
    H, hd, E = num_heads, head_dim, hidden_dim

    # ---- once per (core-split, batch): ONE fused [S,E]@[E,2E] K/V projection ----
    @pl.when(qi == 0)
    def _():
        kv_all = (jnp.dot(vis_ref[...], w_kv_ref[...],
                          preferred_element_type=jnp.float32)
                  + b_kv_ref[...]).astype(cdt)                          # [S, 2E]
        for h in range(H):                                              # static scatter per head
            k_cache_ref[h] = kv_all[:, h * hd:(h + 1) * hd]
            v_cache_ref[h] = kv_all[:, E + h * hd:E + (h + 1) * hd]

    # ---- per-query-tile work ----
    q_global = split * nq_per_split + qi
    q_start = pl.multiple_of(q_global * tq, tq)
    vis_tile = vis_ref[pl.ds(q_start, tq), :]                           # [TQ, E]

    # fused audio projection; column E of the packed weight holds the folded gate projection
    ap_all = jnp.dot(aud_ref[...], w_apg_ref[...],
                     preferred_element_type=jnp.float32) + b_apg_ref[...]   # [TQ, Eg] f32
    audio_p = ap_all[:, :E]                                             # [TQ, E] f32
    gate = jax.nn.sigmoid(ap_all[:, E:E + 1])                           # [TQ, 1] f32

    # fused Q projection (all heads in one [E,E] matmul), static scatter into per-head buffer
    q_all = (jnp.dot(audio_p.astype(cdt), w_q_ref[...],
                     preferred_element_type=jnp.float32) + b_q_ref[...]).astype(cdt)
    for h in range(H):
        q_buf_ref[h] = q_all[:, h * hd:(h + 1) * hd]

    scale = 1.0 / math.sqrt(hd)

    # ---- per-head attention: one [TQ,S] score tile live at a time; pure stores of o_h ----
    @pl.loop(0, H)
    def _(h):
        q_h = q_buf_ref[h]                                              # [TQ, hd]
        k_h = k_cache_ref[h]                                            # [S,  hd]
        v_h = v_cache_ref[h]                                            # [S,  hd]
        s = lax.dot_general(q_h, k_h, (((1,), (1,)), ((), ())),
                            preferred_element_type=jnp.float32) * scale     # [TQ, S]
        m = jnp.max(s, axis=-1, keepdims=True)
        p = jnp.exp(s - m)
        p = p * pl.reciprocal(jnp.sum(p, axis=-1, keepdims=True), approx=True)
        o_buf_ref[h] = jnp.dot(p.astype(cdt), v_h,
                               preferred_element_type=jnp.float32).astype(cdt)   # [TQ, hd]

    # ---- single fused output projection across all heads (no accumulator RMW) ----
    o_cat = jnp.concatenate([o_buf_ref[h] for h in range(H)], axis=-1)  # [TQ, E]
    attended = jnp.dot(o_cat, w_o_ref[...],
                       preferred_element_type=jnp.float32) + b_o_ref[...]        # [TQ, E] f32

    fused = gate * attended + (1.0 - gate) * vis_tile.astype(jnp.float32)
    out_ref[...] = fused.astype(out_ref.dtype)


def _round_up(x, m):
    return (x + m - 1) // m * m


def _choose_query_tile(seq_len):
    if seq_len <= 512:
        return seq_len
    for t in (512, 256, 128, 64, 32, 16, 8):
        if seq_len % t == 0:
            return t
    return seq_len


def gated_cross_attention(vision_emb, audio_emb, params, *, num_heads, query_tile=None):
    """vision_emb: [B, S, E], audio_emb: [B, S, Da] -> [B, S, E]."""
    B, S, E = vision_emb.shape
    _, _, Da = audio_emb.shape
    assert E % num_heads == 0, "hidden_dim must be divisible by num_heads"
    hd = E // num_heads
    dt = vision_emb.dtype
    f32 = jnp.float32

    tq = _choose_query_tile(S) if query_tile is None else query_tile
    assert S % tq == 0, "query_tile must divide seq_len"
    assert tq == S or tq % 8 == 0, "query_tile must be the full sequence or a multiple of 8"
    nq = S // tq

    # Megacore: when the batch axis alone cannot feed two TensorCores, split the query tiles
    # across a leading "parallel" axis (each split recomputes its own K/V cache once).
    nsplit = 2 if (B == 1 and nq >= 2 and nq % 2 == 0) else 1
    nqs = nq // nsplit

    # ---- one-time wrapper-side weight packing ([in, out] layout, head-contiguous cols) ----
    Eg = _round_up(E + 1, 128)                              # audio_proj cols + gate col (+pad)
    w_ap_t = params["w_ap"].T.astype(f32)                   # [Da, E]
    b_ap = params["b_ap"].reshape(1, E).astype(f32)
    w_g_t = params["w_g"].reshape(1, E).T.astype(f32)       # [E, 1]
    b_g = params["b_g"].reshape(1, 1).astype(f32)

    w_apg = jnp.zeros((Da, Eg), f32)
    w_apg = w_apg.at[:, :E].set(w_ap_t).at[:, E:E + 1].set(w_ap_t @ w_g_t)
    b_apg = jnp.zeros((1, Eg), f32)
    b_apg = b_apg.at[:, :E].set(b_ap).at[:, E:E + 1].set(b_ap @ w_g_t + b_g)

    w_qp = params["w_q"].T.astype(f32)                      # [E, E] head-contiguous out cols
    b_qp = params["b_q"].reshape(1, E).astype(f32)
    w_kvp = jnp.concatenate([params["w_k"].T, params["w_v"].T], axis=1).astype(f32)   # [E, 2E]
    b_kvp = jnp.concatenate([params["b_k"].reshape(1, E),
                             params["b_v"].reshape(1, E)], axis=1).astype(f32)        # [1, 2E]
    w_op = params["w_o"].T.astype(f32)                      # [E, E] head-contiguous in rows
    b_op = params["b_o"].reshape(1, E).astype(f32)

    # MXU operands in compute dtype; biases stay f32 (added after f32 accumulation).
    w_apg, w_qp, w_kvp, w_op = [w.astype(dt) for w in (w_apg, w_qp, w_kvp, w_op)]

    kernel = functools.partial(_gated_xattn_kernel, num_heads=num_heads, head_dim=hd,
                               hidden_dim=E, tq=tq, nq_per_split=nqs)

    def wspec(shape):
        nd = len(shape)
        return pl.BlockSpec(shape, lambda s, b, q: (0,) * nd,
                            pipeline_mode=pl.Buffered(1))    # grid-invariant: single buffer

    in_specs = [
        pl.BlockSpec((None, S, E), lambda s, b, q: (b, 0, 0)),              # vision: full seq
        pl.BlockSpec((None, tq, Da), lambda s, b, q: (b, s * nqs + q, 0)),  # audio tile
        wspec(w_apg.shape), wspec(b_apg.shape),
        wspec(w_qp.shape), wspec(b_qp.shape),
        wspec(w_kvp.shape), wspec(b_kvp.shape),
        wspec(w_op.shape), wspec(b_op.shape),
    ]
    out_spec = pl.BlockSpec((None, tq, E), lambda s, b, q: (b, s * nqs + q, 0))

    scratch_shapes = [
        pltpu.VMEM((num_heads, S, hd), dt),     # K cache (split, lane-dense per head)
        pltpu.VMEM((num_heads, S, hd), dt),     # V cache
        pltpu.VMEM((num_heads, tq, hd), dt),    # per-head Q for the current tile
        pltpu.VMEM((num_heads, tq, hd), dt),    # per-head attention output
    ]

    # ---- VMEM accounting (v7x has only 64 MiB physical per TensorCore) ----
    isz = jnp.dtype(dt).itemsize
    weight_bytes = sum(int(a.size) * a.dtype.itemsize
                       for a in (w_apg, b_apg, w_qp, b_qp, w_kvp, b_kvp, w_op, b_op))
    io_bytes = 2 * (S * E + tq * Da + tq * E) * isz          # double-buffered tensor blocks
    scratch_bytes = (2 * num_heads * S * hd + 2 * num_heads * tq * hd) * isz
    transient_bytes = 4 * (tq * S + 2 * S * E + 4 * tq * max(E, Eg))     # f32 temporaries
    need = weight_bytes + io_bytes + scratch_bytes + transient_bytes
    try:
        phys_vmem = pltpu.get_tpu_info().vmem_capacity_bytes
    except Exception:
        phys_vmem = 64 * 1024 * 1024
    vmem_limit = int(min(int(phys_vmem * 0.85), max(2 * need, 32 * 1024 * 1024)))

    return pl.pallas_call(
        kernel,
        out_shape=jax.ShapeDtypeStruct((B, S, E), dt),
        grid_spec=pltpu.PrefetchScalarGridSpec(
            num_scalar_prefetch=0,
            grid=(nsplit, B, nqs),
            in_specs=in_specs,
            out_specs=out_spec,
            scratch_shapes=scratch_shapes),
        compiler_params=pltpu.CompilerParams(
            dimension_semantics=("parallel", "parallel", "arbitrary"),
            vmem_limit_bytes=vmem_limit),
    )(vision_emb, audio_emb,
      w_apg, b_apg, w_qp, b_qp, w_kvp, b_kvp, w_op, b_op)


def _reference(vision_emb, audio_emb, params, *, num_heads):
    """Pure-JAX reference mirroring the torch module (for validation)."""
    B, S, E = vision_emb.shape
    hd = E // num_heads
    audio_p = audio_emb @ params["w_ap"].T + params["b_ap"][0]
    q = audio_p @ params["w_q"].T + params["b_q"][0]
    k = vision_emb @ params["w_k"].T + params["b_k"][0]
    v = vision_emb @ params["w_v"].T + params["b_v"][0]

    def split(x):
        return x.reshape(B, S, num_heads, hd).transpose(0, 2, 1, 3)

    qh, kh, vh = split(q), split(k), split(v)
    s = jnp.einsum("bhqd,bhkd->bhqk", qh, kh) / math.sqrt(hd)
    p = jax.nn.softmax(s, axis=-1)
    o = jnp.einsum("bhqk,bhkd->bhqd", p, vh).transpose(0, 2, 1, 3).reshape(B, S, E)
    attended = o @ params["w_o"].T + params["b_o"][0]
    gate = jax.nn.sigmoid(audio_p @ params["w_g"].T + params["b_g"][0])
    return gate * attended + (1.0 - gate) * vision_emb


if __name__ == "__main__":
    # Small shapes consistent with the module's forward (vision_dim == hidden_dim).
    B, S = 2, 8
    vision_dim = 32
    audio_dim = 16
    hidden_dim = vision_dim
    num_heads = 4

    key = jax.random.PRNGKey(0)
    ks = jax.random.split(key, 16)

    def init(k, shape, scale=0.05):
        return (scale * jax.random.normal(k, shape)).astype(jnp.float32)

    params = {
        "w_ap": init(ks[0], (vision_dim, audio_dim)),
        "b_ap": init(ks[1], (1, vision_dim)),
        "w_q":  init(ks[2], (hidden_dim, hidden_dim)),
        "b_q":  init(ks[3], (1, hidden_dim)),
        "w_k":  init(ks[4], (hidden_dim, hidden_dim)),
        "b_k":  init(ks[5], (1, hidden_dim)),
        "w_v":  init(ks[6], (hidden_dim, hidden_dim)),
        "b_v":  init(ks[7], (1, hidden_dim)),
        "w_o":  init(ks[8], (hidden_dim, hidden_dim)),
        "b_o":  init(ks[9], (1, hidden_dim)),
        "w_g":  init(ks[10], (1, hidden_dim)),
        "b_g":  init(ks[11], (1, 1)),
    }

    vision_emb = init(ks[12], (B, S, vision_dim), scale=1.0)
    audio_emb = init(ks[13], (B, S, audio_dim), scale=1.0)

    # Tolerance is 2e-3: the EUP approximate reciprocal in the softmax and the wrapper-folded
    # gate projection perturb results by ~1e-4 relative; real bugs would be O(0.1) errors.
    out = gated_cross_attention(vision_emb, audio_emb, params, num_heads=num_heads)
    out = jax.block_until_ready(out)
    ref = _reference(vision_emb, audio_emb, params, num_heads=num_heads)
    assert out.shape == (B, S, hidden_dim)
    assert jnp.allclose(out, ref, atol=2e-3, rtol=2e-3), "mismatch vs JAX reference (single tile)"

    # Second config: B == 1 with multiple query tiles -> exercises the core-split grid axis
    # and the per-split K/V cache recompute path.
    vision2 = init(ks[14], (1, 16, vision_dim), scale=1.0)
    audio2 = init(ks[15], (1, 16, audio_dim), scale=1.0)
    out2 = gated_cross_attention(vision2, audio2, params, num_heads=num_heads, query_tile=8)
    out2 = jax.block_until_ready(out2)
    ref2 = _reference(vision2, audio2, params, num_heads=num_heads)
    assert jnp.allclose(out2, ref2, atol=2e-3, rtol=2e-3), "mismatch vs JAX reference (tiled)"

    # NOTE: these are correctness-scale shapes; production-scale (E=768, S~1k+) benchmarking
    # should be done separately — at these sizes every tile is smaller than one vreg.
    print("KERNEL_OK")
</pallas_src>

<mosaic_0001>
module attributes {stable_mosaic.version = 11 : i64} {
  func.func @_gated_xattn_kernel(%arg0: i32, %arg1: i32, %arg2: i32, %arg3: memref<1x8x32xf32, #tpu.memory_space<vmem>>, %arg4: memref<1x8x16xf32, #tpu.memory_space<vmem>>, %arg5: memref<16x128xf32, #tpu.memory_space<vmem>>, %arg6: memref<1x128xf32, #tpu.memory_space<vmem>>, %arg7: memref<32x32xf32, #tpu.memory_space<vmem>>, %arg8: memref<1x32xf32, #tpu.memory_space<vmem>>, %arg9: memref<32x64xf32, #tpu.memory_space<vmem>>, %arg10: memref<1x64xf32, #tpu.memory_space<vmem>>, %arg11: memref<32x32xf32, #tpu.memory_space<vmem>>, %arg12: memref<1x32xf32, #tpu.memory_space<vmem>>, %arg13: memref<1x8x32xf32, #tpu.memory_space<vmem>>, %arg14: memref<4x8x8xf32, #tpu.memory_space<vmem>>, %arg15: memref<4x8x8xf32, #tpu.memory_space<vmem>>, %arg16: memref<4x8x8xf32, #tpu.memory_space<vmem>>, %arg17: memref<4x8x8xf32, #tpu.memory_space<vmem>>) attributes {dimension_semantics = [#tpu.dimension_semantics<parallel>, #tpu.dimension_semantics<parallel>, #tpu.dimension_semantics<arbitrary>], iteration_bounds = array<i64: 1, 2, 1>, scalar_prefetch = 0 : i64, scratch_operands = 4 : i64, tpu.core_type = #tpu.core_type<tc>, window_params = [{transform_indices = @transform_0, window_bounds = array<i64: 1, 8, 32>}, {transform_indices = @transform_1, window_bounds = array<i64: 1, 8, 16>}, {pipeline_mode = #tpu.pipeline_mode<synchronous>, transform_indices = @transform_2, window_bounds = array<i64: 16, 128>}, {pipeline_mode = #tpu.pipeline_mode<synchronous>, transform_indices = @transform_3, window_bounds = array<i64: 1, 128>}, {pipeline_mode = #tpu.pipeline_mode<synchronous>, transform_indices = @transform_4, window_bounds = array<i64: 32, 32>}, {pipeline_mode = #tpu.pipeline_mode<synchronous>, transform_indices = @transform_5, window_bounds = array<i64: 1, 32>}, {pipeline_mode = #tpu.pipeline_mode<synchronous>, transform_indices = @transform_6, window_bounds = array<i64: 32, 64>}, {pipeline_mode = #tpu.pipeline_mode<synchronous>, transform_indices = @transform_7, window_bounds = array<i64: 1, 64>}, {pipeline_mode = #tpu.pipeline_mode<synchronous>, transform_indices = @transform_8, window_bounds = array<i64: 32, 32>}, {pipeline_mode = #tpu.pipeline_mode<synchronous>, transform_indices = @transform_9, window_bounds = array<i64: 1, 32>}, {transform_indices = @transform_10, window_bounds = array<i64: 1, 8, 32>}]} {
    %c0_i32 = arith.constant 0 : i32
    %0 = arith.cmpi eq, %arg2, %c0_i32 : i32
    %1 = arith.extui %0 : i1 to i32
    %c0_i32_0 = arith.constant 0 : i32
    %2 = arith.cmpi ne, %1, %c0_i32_0 : i32
    scf.if %2 {
      %c0_48 = arith.constant 0 : index
      %c0_49 = arith.constant 0 : index
      %c0_50 = arith.constant 0 : index
      %70 = vector.load %arg3[%c0_48, %c0_49, %c0_50] : memref<1x8x32xf32, #tpu.memory_space<vmem>>, vector<1x8x32xf32>
      %71 = vector.shape_cast %70 : vector<1x8x32xf32> to vector<8x32xf32>
      %c0_51 = arith.constant 0 : index
      %c0_52 = arith.constant 0 : index
      %72 = vector.load %arg9[%c0_51, %c0_52] : memref<32x64xf32, #tpu.memory_space<vmem>>, vector<32x64xf32>
      %cst_53 = arith.constant dense<0.000000e+00> : vector<8x64xf32>
      %73 = tpu.matmul %71, %72, %cst_53 {dimension_numbers = #tpu.dot_dimension_numbers<[1], [0], [0], [1], [0, 0, 1, 1], [], []>} : vector<8x32xf32>, vector<32x64xf32>, vector<8x64xf32> -> vector<8x64xf32>
      %c0_54 = arith.constant 0 : index
      %c0_55 = arith.constant 0 : index
      %74 = vector.load %arg10[%c0_54, %c0_55] : memref<1x64xf32, #tpu.memory_space<vmem>>, vector<1x64xf32>
      %75 = vector.broadcast %74 : vector<1x64xf32> to vector<8x64xf32>
      %76 = arith.addf %73, %75 : vector<8x64xf32>
      %77 = vector.extract_strided_slice %76 {offsets = [0, 0], sizes = [8, 8], strides = [1, 1]} : vector<8x64xf32> to vector<8x8xf32>
      %c0_56 = arith.constant 0 : index
      %c0_57 = arith.constant 0 : index
      %c0_58 = arith.constant 0 : index
      %78 = vector.load %arg14[%c0_56, %c0_57, %c0_58] : memref<4x8x8xf32, #tpu.memory_space<vmem>>, vector<1x8x8xf32>
      %79 = vector.shape_cast %78 : vector<1x8x8xf32> to vector<8x8xf32>
      %80 = vector.shape_cast %77 : vector<8x8xf32> to vector<1x8x8xf32>
      tpu.vector_store %arg14[%c0_56, %c0_57, %c0_58], %80 {strides = array<i32>} : memref<4x8x8xf32, #tpu.memory_space<vmem>>, vector<1x8x8xf32>,
      %81 = vector.extract_strided_slice %76 {offsets = [0, 32], sizes = [8, 8], strides = [1, 1]} : vector<8x64xf32> to vector<8x8xf32>
      %c0_59 = arith.constant 0 : index
      %c0_60 = arith.constant 0 : index
      %c0_61 = arith.constant 0 : index
      %82 = vector.load %arg15[%c0_59, %c0_60, %c0_61] : memref<4x8x8xf32, #tpu.memory_space<vmem>>, vector<1x8x8xf32>
      %83 = vector.shape_cast %82 : vector<1x8x8xf32> to vector<8x8xf32>
      %84 = vector.shape_cast %81 : vector<8x8xf32> to vector<1x8x8xf32>
      tpu.vector_store %arg15[%c0_59, %c0_60, %c0_61], %84 {strides = array<i32>} : memref<4x8x8xf32, #tpu.memory_space<vmem>>, vector<1x8x8xf32>,
      %85 = vector.extract_strided_slice %76 {offsets = [0, 8], sizes = [8, 8], strides = [1, 1]} : vector<8x64xf32> to vector<8x8xf32>
      %c1_62 = arith.constant 1 : index
      %c0_63 = arith.constant 0 : index
      %c0_64 = arith.constant 0 : index
      %86 = vector.load %arg14[%c1_62, %c0_63, %c0_64] : memref<4x8x8xf32, #tpu.memory_space<vmem>>, vector<1x8x8xf32>
      %87 = vector.shape_cast %86 : vector<1x8x8xf32> to vector<8x8xf32>
      %88 = vector.shape_cast %85 : vector<8x8xf32> to vector<1x8x8xf32>
      tpu.vector_store %arg14[%c1_62, %c0_63, %c0_64], %88 {strides = array<i32>} : memref<4x8x8xf32, #tpu.memory_space<vmem>>, vector<1x8x8xf32>,
      %89 = vector.extract_strided_slice %76 {offsets = [0, 40], sizes = [8, 8], strides = [1, 1]} : vector<8x64xf32> to vector<8x8xf32>
      %c1_65 = arith.constant 1 : index
      %c0_66 = arith.constant 0 : index
      %c0_67 = arith.constant 0 : index
      %90 = vector.load %arg15[%c1_65, %c0_66, %c0_67] : memref<4x8x8xf32, #tpu.memory_space<vmem>>, vector<1x8x8xf32>
      %91 = vector.shape_cast %90 : vector<1x8x8xf32> to vector<8x8xf32>
      %92 = vector.shape_cast %89 : vector<8x8xf32> to vector<1x8x8xf32>
      tpu.vector_store %arg15[%c1_65, %c0_66, %c0_67], %92 {strides = array<i32>} : memref<4x8x8xf32, #tpu.memory_space<vmem>>, vector<1x8x8xf32>,
      %93 = vector.extract_strided_slice %76 {offsets = [0, 16], sizes = [8, 8], strides = [1, 1]} : vector<8x64xf32> to vector<8x8xf32>
      %c2_68 = arith.constant 2 : index
      %c0_69 = arith.constant 0 : index
      %c0_70 = arith.constant 0 : index
      %94 = vector.load %arg14[%c2_68, %c0_69, %c0_70] : memref<4x8x8xf32, #tpu.memory_space<vmem>>, vector<1x8x8xf32>
      %95 = vector.shape_cast %94 : vector<1x8x8xf32> to vector<8x8xf32>
      %96 = vector.shape_cast %93 : vector<8x8xf32> to vector<1x8x8xf32>
      tpu.vector_store %arg14[%c2_68, %c0_69, %c0_70], %96 {strides = array<i32>} : memref<4x8x8xf32, #tpu.memory_space<vmem>>, vector<1x8x8xf32>,
      %97 = vector.extract_strided_slice %76 {offsets = [0, 48], sizes = [8, 8], strides = [1, 1]} : vector<8x64xf32> to vector<8x8xf32>
      %c2_71 = arith.constant 2 : index
      %c0_72 = arith.constant 0 : index
      %c0_73 = arith.constant 0 : index
      %98 = vector.load %arg15[%c2_71, %c0_72, %c0_73] : memref<4x8x8xf32, #tpu.memory_space<vmem>>, vector<1x8x8xf32>
      %99 = vector.shape_cast %98 : vector<1x8x8xf32> to vector<8x8xf32>
      %100 = vector.shape_cast %97 : vector<8x8xf32> to vector<1x8x8xf32>
      tpu.vector_store %arg15[%c2_71, %c0_72, %c0_73], %100 {strides = array<i32>} : memref<4x8x8xf32, #tpu.memory_space<vmem>>, vector<1x8x8xf32>,
      %101 = vector.extract_strided_slice %76 {offsets = [0, 24], sizes = [8, 8], strides = [1, 1]} : vector<8x64xf32> to vector<8x8xf32>
      %c3_74 = arith.constant 3 : index
      %c0_75 = arith.constant 0 : index
      %c0_76 = arith.constant 0 : index
      %102 = vector.load %arg14[%c3_74, %c0_75, %c0_76] : memref<4x8x8xf32, #tpu.memory_space<vmem>>, vector<1x8x8xf32>
      %103 = vector.shape_cast %102 : vector<1x8x8xf32> to vector<8x8xf32>
      %104 = vector.shape_cast %101 : vector<8x8xf32> to vector<1x8x8xf32>
      tpu.vector_store %arg14[%c3_74, %c0_75, %c0_76], %104 {strides = array<i32>} : memref<4x8x8xf32, #tpu.memory_space<vmem>>, vector<1x8x8xf32>,
      %105 = vector.extract_strided_slice %76 {offsets = [0, 56], sizes = [8, 8], strides = [1, 1]} : vector<8x64xf32> to vector<8x8xf32>
      %c3_77 = arith.constant 3 : index
      %c0_78 = arith.constant 0 : index
      %c0_79 = arith.constant 0 : index
      %106 = vector.load %arg15[%c3_77, %c0_78, %c0_79] : memref<4x8x8xf32, #tpu.memory_space<vmem>>, vector<1x8x8xf32>
      %107 = vector.shape_cast %106 : vector<1x8x8xf32> to vector<8x8xf32>
      %108 = vector.shape_cast %105 : vector<8x8xf32> to vector<1x8x8xf32>
      tpu.vector_store %arg15[%c3_77, %c0_78, %c0_79], %108 {strides = array<i32>} : memref<4x8x8xf32, #tpu.memory_space<vmem>>, vector<1x8x8xf32>,
    } else {
    }
    %c1_i32 = arith.constant 1 : i32
    %3 = arith.muli %arg0, %c1_i32 : i32
    %4 = arith.addi %3, %arg2 : i32
    %c8_i32 = arith.constant 8 : i32
    %5 = arith.muli %4, %c8_i32 : i32
    %6 = tpu.assume_multiple %5, 8 : i32
    %c0 = arith.constant 0 : index
    %7 = arith.index_cast %6 : i32 to index
    %c0_1 = arith.constant 0 : index
    %8 = vector.load %arg3[%c0, %7, %c0_1] : memref<1x8x32xf32, #tpu.memory_space<vmem>>, vector<1x8x32xf32>
    %9 = vector.shape_cast %8 : vector<1x8x32xf32> to vector<8x32xf32>
    %c0_2 = arith.constant 0 : index
    %c0_3 = arith.constant 0 : index
    %c0_4 = arith.constant 0 : index
    %10 = vector.load %arg4[%c0_2, %c0_3, %c0_4] : memref<1x8x16xf32, #tpu.memory_space<vmem>>, vector<1x8x16xf32>
    %11 = vector.shape_cast %10 : vector<1x8x16xf32> to vector<8x16xf32>
    %c0_5 = arith.constant 0 : index
    %c0_6 = arith.constant 0 : index
    %12 = vector.load %arg5[%c0_5, %c0_6] : memref<16x128xf32, #tpu.memory_space<vmem>>, vector<16x128xf32>
    %cst = arith.constant dense<0.000000e+00> : vector<8x128xf32>
    %13 = tpu.matmul %11, %12, %cst {dimension_numbers = #tpu.dot_dimension_numbers<[1], [0], [0], [1], [0, 0, 1, 1], [], []>} : vector<8x16xf32>, vector<16x128xf32>, vector<8x128xf32> -> vector<8x128xf32>
    %c0_7 = arith.constant 0 : index
    %c0_8 = arith.constant 0 : index
    %14 = vector.load %arg6[%c0_7, %c0_8] : memref<1x128xf32, #tpu.memory_space<vmem>>, vector<1x128xf32>
    %15 = vector.broadcast %14 : vector<1x128xf32> to vector<8x128xf32>
    %16 = arith.addf %13, %15 : vector<8x128xf32>
    %17 = vector.extract_strided_slice %16 {offsets = [0, 0], sizes = [8, 32], strides = [1, 1]} : vector<8x128xf32> to vector<8x32xf32>
    %18 = vector.extract_strided_slice %16 {offsets = [0, 32], sizes = [8, 1], strides = [1, 1]} : vector<8x128xf32> to vector<8x1xf32>
    %19 = arith.negf %18 : vector<8x1xf32>
    %20 = math.exp %19 : vector<8x1xf32>
    %cst_9 = arith.constant 1.000000e+00 : f32
    %21 = vector.broadcast %cst_9 : f32 to vector<8x1xf32>
    %22 = arith.addf %21, %20 : vector<8x1xf32>
    %23 = arith.divf %21, %22 : vector<8x1xf32>
    %c0_10 = arith.constant 0 : index
    %c0_11 = arith.constant 0 : index
    %24 = vector.load %arg7[%c0_10, %c0_11] : memref<32x32xf32, #tpu.memory_space<vmem>>, vector<32x32xf32>
    %cst_12 = arith.constant dense<0.000000e+00> : vector<8x32xf32>
    %25 = tpu.matmul %17, %24, %cst_12 {dimension_numbers = #tpu.dot_dimension_numbers<[1], [0], [0], [1], [0, 0, 1, 1], [], []>} : vector<8x32xf32>, vector<32x32xf32>, vector<8x32xf32> -> vector<8x32xf32>
    %c0_13 = arith.constant 0 : index
    %c0_14 = arith.constant 0 : index
    %26 = vector.load %arg8[%c0_13, %c0_14] : memref<1x32xf32, #tpu.memory_space<vmem>>, vector<1x32xf32>
    %27 = vector.broadcast %26 : vector<1x32xf32> to vector<8x32xf32>
    %28 = arith.addf %25, %27 : vector<8x32xf32>
    %29 = vector.extract_strided_slice %28 {offsets = [0, 0], sizes = [8, 8], strides = [1, 1]} : vector<8x32xf32> to vector<8x8xf32>
    %c0_15 = arith.constant 0 : index
    %c0_16 = arith.constant 0 : index
    %c0_17 = arith.constant 0 : index
    %30 = vector.load %arg16[%c0_15, %c0_16, %c0_17] : memref<4x8x8xf32, #tpu.memory_space<vmem>>, vector<1x8x8xf32>
    %31 = vector.shape_cast %30 : vector<1x8x8xf32> to vector<8x8xf32>
    %32 = vector.shape_cast %29 : vector<8x8xf32> to vector<1x8x8xf32>
    tpu.vector_store %arg16[%c0_15, %c0_16, %c0_17], %32 {strides = array<i32>} : memref<4x8x8xf32, #tpu.memory_space<vmem>>, vector<1x8x8xf32>,
    %33 = vector.extract_strided_slice %28 {offsets = [0, 8], sizes = [8, 8], strides = [1, 1]} : vector<8x32xf32> to vector<8x8xf32>
    %c1 = arith.constant 1 : index
    %c0_18 = arith.constant 0 : index
    %c0_19 = arith.constant 0 : index
    %34 = vector.load %arg16[%c1, %c0_18, %c0_19] : memref<4x8x8xf32, #tpu.memory_space<vmem>>, vector<1x8x8xf32>
    %35 = vector.shape_cast %34 : vector<1x8x8xf32> to vector<8x8xf32>
    %36 = vector.shape_cast %33 : vector<8x8xf32> to vector<1x8x8xf32>
    tpu.vector_store %arg16[%c1, %c0_18, %c0_19], %36 {strides = array<i32>} : memref<4x8x8xf32, #tpu.memory_space<vmem>>, vector<1x8x8xf32>,
    %37 = vector.extract_strided_slice %28 {offsets = [0, 16], sizes = [8, 8], strides = [1, 1]} : vector<8x32xf32> to vector<8x8xf32>
    %c2 = arith.constant 2 : index
    %c0_20 = arith.constant 0 : index
    %c0_21 = arith.constant 0 : index
    %38 = vector.load %arg16[%c2, %c0_20, %c0_21] : memref<4x8x8xf32, #tpu.memory_space<vmem>>, vector<1x8x8xf32>
    %39 = vector.shape_cast %38 : vector<1x8x8xf32> to vector<8x8xf32>
    %40 = vector.shape_cast %37 : vector<8x8xf32> to vector<1x8x8xf32>
    tpu.vector_store %arg16[%c2, %c0_20, %c0_21], %40 {strides = array<i32>} : memref<4x8x8xf32, #tpu.memory_space<vmem>>, vector<1x8x8xf32>,
    %41 = vector.extract_strided_slice %28 {offsets = [0, 24], sizes = [8, 8], strides = [1, 1]} : vector<8x32xf32> to vector<8x8xf32>
    %c3 = arith.constant 3 : index
    %c0_22 = arith.constant 0 : index
    %c0_23 = arith.constant 0 : index
    %42 = vector.load %arg16[%c3, %c0_22, %c0_23] : memref<4x8x8xf32, #tpu.memory_space<vmem>>, vector<1x8x8xf32>
    %43 = vector.shape_cast %42 : vector<1x8x8xf32> to vector<8x8xf32>
    %44 = vector.shape_cast %41 : vector<8x8xf32> to vector<1x8x8xf32>
    tpu.vector_store %arg16[%c3, %c0_22, %c0_23], %44 {strides = array<i32>} : memref<4x8x8xf32, #tpu.memory_space<vmem>>, vector<1x8x8xf32>,
    %c0_i32_24 = arith.constant 0 : i32
    %c4_i32 = arith.constant 4 : i32
    %45 = arith.addi %c0_i32_24, %c4_i32 : i32
    %c1_i32_25 = arith.constant 1 : i32
    scf.for %arg18 = %c0_i32_24 to %45 step %c1_i32_25  : i32 {
      %c1_i32_48 = arith.constant 1 : i32
      %70 = arith.muli %arg18, %c1_i32_48 : i32
      %c0_i32_49 = arith.constant 0 : i32
      %71 = arith.addi %c0_i32_49, %70 : i32
      %72 = arith.index_cast %71 : i32 to index
      %c0_50 = arith.constant 0 : index
      %c0_51 = arith.constant 0 : index
      %73 = vector.load %arg16[%72, %c0_50, %c0_51] : memref<4x8x8xf32, #tpu.memory_space<vmem>>, vector<1x8x8xf32>
      %74 = vector.shape_cast %73 : vector<1x8x8xf32> to vector<8x8xf32>
      %75 = arith.index_cast %71 : i32 to index
      %c0_52 = arith.constant 0 : index
      %c0_53 = arith.constant 0 : index
      %76 = vector.load %arg14[%75, %c0_52, %c0_53] : memref<4x8x8xf32, #tpu.memory_space<vmem>>, vector<1x8x8xf32>
      %77 = vector.shape_cast %76 : vector<1x8x8xf32> to vector<8x8xf32>
      %78 = arith.index_cast %71 : i32 to index
      %c0_54 = arith.constant 0 : index
      %c0_55 = arith.constant 0 : index
      %79 = vector.load %arg15[%78, %c0_54, %c0_55] : memref<4x8x8xf32, #tpu.memory_space<vmem>>, vector<1x8x8xf32>
      %80 = vector.shape_cast %79 : vector<1x8x8xf32> to vector<8x8xf32>
      %cst_56 = arith.constant dense<0.000000e+00> : vector<8x8xf32>
      %81 = tpu.matmul %74, %77, %cst_56 {dimension_numbers = #tpu.dot_dimension_numbers<[1], [1], [0], [0], [0, 0, 1, 0], [], []>} : vector<8x8xf32>, vector<8x8xf32>, vector<8x8xf32> -> vector<8x8xf32>
      %cst_57 = arith.constant 0.353553385 : f32
      %82 = vector.broadcast %cst_57 : f32 to vector<8x8xf32>
      %83 = arith.mulf %81, %82 : vector<8x8xf32>
      %cst_58 = arith.constant dense<0xFF800000> : vector<8xf32>
      %84 = vector.multi_reduction <maximumf>, %83, %cst_58 [1] : vector<8x8xf32> to vector<8xf32>
      %85 = vector.shape_cast %84 : vector<8xf32> to vector<8x1xf32>
      %86 = vector.broadcast %85 : vector<8x1xf32> to vector<8x8xf32>
      %87 = arith.subf %83, %86 : vector<8x8xf32>
      %88 = math.exp %87 : vector<8x8xf32>
      %cst_59 = arith.constant dense<0.000000e+00> : vector<8xf32>
      %89 = vector.multi_reduction <add>, %88, %cst_59 [1] : vector<8x8xf32> to vector<8xf32>
      %90 = vector.shape_cast %89 : vector<8xf32> to vector<8x1xf32>
      %91 = tpu.reciprocal %90 {approx = true} : vector<8x1xf32> -> vector<8x1xf32>
      %92 = vector.broadcast %91 : vector<8x1xf32> to vector<8x8xf32>
      %93 = arith.mulf %88, %92 : vector<8x8xf32>
      %cst_60 = arith.constant dense<0.000000e+00> : vector<8x8xf32>
      %94 = tpu.matmul %93, %80, %cst_60 {dimension_numbers = #tpu.dot_dimension_numbers<[1], [0], [0], [1], [0, 0, 1, 1], [], []>} : vector<8x8xf32>, vector<8x8xf32>, vector<8x8xf32> -> vector<8x8xf32>
      %95 = arith.index_cast %71 : i32 to index
      %c0_61 = arith.constant 0 : index
      %c0_62 = arith.constant 0 : index
      %96 = vector.load %arg17[%95, %c0_61, %c0_62] : memref<4x8x8xf32, #tpu.memory_space<vmem>>, vector<1x8x8xf32>
      %97 = vector.shape_cast %96 : vector<1x8x8xf32> to vector<8x8xf32>
      %98 = vector.shape_cast %94 : vector<8x8xf32> to vector<1x8x8xf32>
      tpu.vector_store %arg17[%95, %c0_61, %c0_62], %98 {strides = array<i32>} : memref<4x8x8xf32, #tpu.memory_space<vmem>>, vector<1x8x8xf32>,
    }
    %c4_i32_26 = arith.constant 4 : i32
    %c0_27 = arith.constant 0 : index
    %c0_28 = arith.constant 0 : index
    %c0_29 = arith.constant 0 : index
    %46 = vector.load %arg17[%c0_27, %c0_28, %c0_29] : memref<4x8x8xf32, #tpu.memory_space<vmem>>, vector<1x8x8xf32>
    %47 = vector.shape_cast %46 : vector<1x8x8xf32> to vector<8x8xf32>
    %c1_30 = arith.constant 1 : index
    %c0_31 = arith.constant 0 : index
    %c0_32 = arith.constant 0 : index
    %48 = vector.load %arg17[%c1_30, %c0_31, %c0_32] : memref<4x8x8xf32, #tpu.memory_space<vmem>>, vector<1x8x8xf32>
    %49 = vector.shape_cast %48 : vector<1x8x8xf32> to vector<8x8xf32>
    %c2_33 = arith.constant 2 : index
    %c0_34 = arith.constant 0 : index
    %c0_35 = arith.constant 0 : index
    %50 = vector.load %arg17[%c2_33, %c0_34, %c0_35] : memref<4x8x8xf32, #tpu.memory_space<vmem>>, vector<1x8x8xf32>
    %51 = vector.shape_cast %50 : vector<1x8x8xf32> to vector<8x8xf32>
    %c3_36 = arith.constant 3 : index
    %c0_37 = arith.constant 0 : index
    %c0_38 = arith.constant 0 : index
    %52 = vector.load %arg17[%c3_36, %c0_37, %c0_38] : memref<4x8x8xf32, #tpu.memory_space<vmem>>, vector<1x8x8xf32>
    %53 = vector.shape_cast %52 : vector<1x8x8xf32> to vector<8x8xf32>
    %54 = tpu.concatenate %47, %49, %51, %53 in 1 : vector<8x8xf32>, vector<8x8xf32>, vector<8x8xf32>, vector<8x8xf32> -> vector<8x32xf32>
    %c0_39 = arith.constant 0 : index
    %c0_40 = arith.constant 0 : index
    %55 = vector.load %arg11[%c0_39, %c0_40] : memref<32x32xf32, #tpu.memory_space<vmem>>, vector<32x32xf32>
    %cst_41 = arith.constant dense<0.000000e+00> : vector<8x32xf32>
    %56 = tpu.matmul %54, %55, %cst_41 {dimension_numbers = #tpu.dot_dimension_numbers<[1], [0], [0], [1], [0, 0, 1, 1], [], []>} : vector<8x32xf32>, vector<32x32xf32>, vector<8x32xf32> -> vector<8x32xf32>
    %c0_42 = arith.constant 0 : index
    %c0_43 = arith.constant 0 : index
    %57 = vector.load %arg12[%c0_42, %c0_43] : memref<1x32xf32, #tpu.memory_space<vmem>>, vector<1x32xf32>
    %58 = vector.broadcast %57 : vector<1x32xf32> to vector<8x32xf32>
    %59 = arith.addf %56, %58 : vector<8x32xf32>
    %60 = vector.broadcast %23 : vector<8x1xf32> to vector<8x32xf32>
    %61 = arith.mulf %60, %59 : vector<8x32xf32>
    %cst_44 = arith.constant 1.000000e+00 : f32
    %62 = vector.broadcast %cst_44 : f32 to vector<8x1xf32>
    %63 = arith.subf %62, %23 : vector<8x1xf32>
    %64 = vector.broadcast %63 : vector<8x1xf32> to vector<8x32xf32>
    %65 = arith.mulf %64, %9 : vector<8x32xf32>
    %66 = arith.addf %61, %65 : vector<8x32xf32>
    %c0_45 = arith.constant 0 : index
    %c0_46 = arith.constant 0 : index
    %c0_47 = arith.constant 0 : index
    %67 = vector.load %arg13[%c0_45, %c0_46, %c0_47] : memref<1x8x32xf32, #tpu.memory_space<vmem>>, vector<1x8x32xf32>
    %68 = vector.shape_cast %67 : vector<1x8x32xf32> to vector<8x32xf32>
    %69 = vector.shape_cast %66 : vector<8x32xf32> to vector<1x8x32xf32>
    tpu.vector_store %arg13[%c0_45, %c0_46, %c0_47], %69 {strides = array<i32>} : memref<1x8x32xf32, #tpu.memory_space<vmem>>, vector<1x8x32xf32>,
    return
  }
  func.func @transform_0(%arg0: i32, %arg1: i32, %arg2: i32) -> (i32, i32, i32) {
    %c0_i32 = arith.constant 0 : i32
    %c0_i32_0 = arith.constant 0 : i32
    %c0_i32_1 = arith.constant 0 : i32
    return %arg1, %c0_i32, %c0_i32_0 : i32, i32, i32
  }
  func.func @transform_1(%arg0: i32, %arg1: i32, %arg2: i32) -> (i32, i32, i32) {
    %c1_i32 = arith.constant 1 : i32
    %0 = arith.muli %arg0, %c1_i32 : i32
    %1 = arith.addi %0, %arg2 : i32
    %c0_i32 = arith.constant 0 : i32
    %c0_i32_0 = arith.constant 0 : i32
    return %arg1, %1, %c0_i32 : i32, i32, i32
  }
  func.func @transform_2(%arg0: i32, %arg1: i32, %arg2: i32) -> (i32, i32) {
    %c0_i32 = arith.constant 0 : i32
    %c0_i32_0 = arith.constant 0 : i32
    %c0_i32_1 = arith.constant 0 : i32
    return %c0_i32, %c0_i32_0 : i32, i32
  }
  func.func @transform_3(%arg0: i32, %arg1: i32, %arg2: i32) -> (i32, i32) {
    %c0_i32 = arith.constant 0 : i32
    %c0_i32_0 = arith.constant 0 : i32
    %c0_i32_1 = arith.constant 0 : i32
    return %c0_i32, %c0_i32_0 : i32, i32
  }
  func.func @transform_4(%arg0: i32, %arg1: i32, %arg2: i32) -> (i32, i32) {
    %c0_i32 = arith.constant 0 : i32
    %c0_i32_0 = arith.constant 0 : i32
    %c0_i32_1 = arith.constant 0 : i32
    return %c0_i32, %c0_i32_0 : i32, i32
  }
  func.func @transform_5(%arg0: i32, %arg1: i32, %arg2: i32) -> (i32, i32) {
    %c0_i32 = arith.constant 0 : i32
    %c0_i32_0 = arith.constant 0 : i32
    %c0_i32_1 = arith.constant 0 : i32
    return %c0_i32, %c0_i32_0 : i32, i32
  }
  func.func @transform_6(%arg0: i32, %arg1: i32, %arg2: i32) -> (i32, i32) {
    %c0_i32 = arith.constant 0 : i32
    %c0_i32_0 = arith.constant 0 : i32
    %c0_i32_1 = arith.constant 0 : i32
    return %c0_i32, %c0_i32_0 : i32, i32
  }
  func.func @transform_7(%arg0: i32, %arg1: i32, %arg2: i32) -> (i32, i32) {
    %c0_i32 = arith.constant 0 : i32
    %c0_i32_0 = arith.constant 0 : i32
    %c0_i32_1 = arith.constant 0 : i32
    return %c0_i32, %c0_i32_0 : i32, i32
  }
  func.func @transform_8(%arg0: i32, %arg1: i32, %arg2: i32) -> (i32, i32) {
    %c0_i32 = arith.constant 0 : i32
    %c0_i32_0 = arith.constant 0 : i32
    %c0_i32_1 = arith.constant 0 : i32
    return %c0_i32, %c0_i32_0 : i32, i32
  }
  func.func @transform_9(%arg0: i32, %arg1: i32, %arg2: i32) -> (i32, i32) {
    %c0_i32 = arith.constant 0 : i32
    %c0_i32_0 = arith.constant 0 : i32
    %c0_i32_1 = arith.constant 0 : i32
    return %c0_i32, %c0_i32_0 : i32, i32
  }
  func.func @transform_10(%arg0: i32, %arg1: i32, %arg2: i32) -> (i32, i32, i32) {
    %c1_i32 = arith.constant 1 : i32
    %0 = arith.muli %arg0, %c1_i32 : i32
    %1 = arith.addi %0, %arg2 : i32
    %c0_i32 = arith.constant 0 : i32
    %c0_i32_0 = arith.constant 0 : i32
    return %arg1, %1, %c0_i32 : i32, i32, i32
  }
}

</mosaic_0001>

<llo_original>
// kernel: tpu_custom_call.1
$region0: #{tpu_custom_call.1}
  #allocation0 [shape = 'u32[]', space=smem, size = 0x4, offset = 0x4, fixed_abs, tag = 'smem constant byte address 0x4 - core index']
  #allocation1 [shape = 'u32[72,128]{1,0:T(1,128)}', space=vmem, size = 0x9000, scoped, tag = 'internal scratch']
  #allocation2 [shape = 'f32[4,8,8]{2,1,0:T(8,128)}', space=vmem, size = 0x4000, scoped, tag = 'scratch operand']
  #allocation3 [shape = 'f32[4,8,8]{2,1,0:T(8,128)}', space=vmem, size = 0x4000, scoped, tag = 'scratch operand']
  #allocation4 [shape = 'f32[4,8,8]{2,1,0:T(8,128)}', space=vmem, size = 0x4000, scoped, tag = 'scratch operand']
  #allocation5 [shape = 'f32[4,8,8]{2,1,0:T(8,128)}', space=vmem, size = 0x4000, scoped, tag = 'scratch operand']
  %s0 = inlined_call_operand.hbm [shape: f32[2,8,32], index: 0, kind: input, shape index: {}]
  %s1 = inlined_call_operand.hbm [shape: f32[2,8,16], index: 1, kind: input, shape index: {}]
  %s2 = inlined_call_operand.hbm [shape: f32[16,128], index: 2, kind: input, shape index: {}]
  %s3 = inlined_call_operand.vmem [shape: f32[1,128], index: 3, kind: input, shape index: {}]
  %s4 = inlined_call_operand.hbm [shape: f32[32,32], index: 4, kind: input, shape index: {}]
  %s5 = inlined_call_operand.vmem [shape: f32[1,32], index: 5, kind: input, shape index: {}]
  %s6 = inlined_call_operand.hbm [shape: f32[32,64], index: 6, kind: input, shape index: {}]
  %s7 = inlined_call_operand.vmem [shape: f32[1,64], index: 7, kind: input, shape index: {}]
  %s8 = inlined_call_operand.hbm [shape: f32[32,32], index: 8, kind: input, shape index: {}]
  %s9 = inlined_call_operand.vmem [shape: f32[1,32], index: 9, kind: input, shape index: {}]
  %s10 = inlined_call_operand.hbm [shape: f32[2,8,32], index: 10, kind: output, shape index: {}]
  %s11 = sld [smem:[#allocation0]]
  $region108: #{tpu_custom_call.1} parent=0
    _
  %s13 = ssub.s32 1, %s11
  %s14 = scalar_select 0, %s13, %s11
  $region1: #{tpu_custom_call.1} parent=0
    #allocation6 [shape = 'u8[8192]{0}', space=vmem, size = 0x2000, scoped, tag = 'input window, operand 0']
    #allocation7 [shape = 's32[2]{0}', space=sflag, size = 0x8, scoped, tag = 'scoped memory for tpu_custom_call.1']
    #allocation8 [shape = 's32[2]{0}', space=sflag, size = 0x8, scoped, tag = 'scoped memory for tpu_custom_call.1']
    #allocation9 [shape = 'u8[8192]{0}', space=vmem, size = 0x2000, scoped, tag = 'input window, operand 1']
    #allocation10 [shape = 's32[2]{0}', space=sflag, size = 0x8, scoped, tag = 'scoped memory for tpu_custom_call.1']
    #allocation11 [shape = 'u8[8192]{0}', space=vmem, size = 0x2000, scoped, tag = 'input window, operand 2, single buffered']
    #allocation12 [shape = 'u8[16384]{0}', space=vmem, size = 0x4000, scoped, tag = 'input window, operand 4, single buffered']
    #allocation13 [shape = 's32[1]{0}', space=sflag, size = 0x4, scoped, tag = 'scoped memory for tpu_custom_call.1']
    #allocation14 [shape = 'u8[16384]{0}', space=vmem, size = 0x4000, scoped, tag = 'input window, operand 6, single buffered']
    #allocation15 [shape = 'u8[16384]{0}', space=vmem, size = 0x4000, scoped, tag = 'input window, operand 8, single buffered']
    #allocation16 [shape = 's32[1]{0}', space=sflag, size = 0x4, scoped, tag = 'scoped memory for tpu_custom_call.1']
    #allocation17 [shape = 'u8[8192]{0}', space=vmem, size = 0x2000, scoped, tag = 'output window, operand 0']
    %15 = vsyncpa [#allocation7], 0
    %s16 = scalar_lea.sflag [#allocation7], 1
    %17 = vsyncpa %s16, 0
    %18 = vsyncpa [#allocation10], 0
    %s19 = scalar_lea.sflag [#allocation10], 1
    %20 = vsyncpa %s19, 0
    %21 = vsyncpa [#allocation13], 0
    %22 = vsyncpa [#allocation16], 0
    %23 = vsyncpa [#allocation8], 0
    %s24 = scalar_lea.sflag [#allocation8], 1
    %25 = vsyncpa %s24, 0
    loop: start=0, step=1, limit=4
    $region2: #{tpu_custom_call.1} parent=1 // loop_pre_header
      _
    $region3: #{tpu_custom_call.1} parent=1 // loop_header
      %s27 = sphi 0, %s31
      %p28 = scmp.ge.s32.totalorder %s27, 4
      %s34 = sphi 0, %s53
      %s35 = sphi 0, %s49
      %s36 = sphi 0, %s45
      %s37 = sphi 0, %s34
      %s38 = sphi 0, %s35
      %s39 = sphi 0, %s36
      %s40 = sphi 0, %s37
      %s41 = sphi 0, %s38
      %s42 = sphi 0, %s39
      %s56 = sphi 0, %s58
      %s59 = sphi 0, %s56
      %s60 = sphi 0, %s59
      %s76 = sphi 0, %s60
      %s86 = sphi 0, %s88
      %s89 = sphi 0, %s86
      %s90 = sphi 0, %s89
      %s106 = sphi 0, %s90
      %s110 = sphi 0, %s110
      %s112 = sphi 0, %s110
      %s113 = sphi 0, %s112
      %s127 = sphi 0, %s113
      %s131 = sphi 0, %s131
      %s133 = sphi 0, %s131
      %s134 = sphi 0, %s133
      %s148 = sphi 0, %s134
      %s152 = sphi 0, %s152
      %s154 = sphi 0, %s152
      %s155 = sphi 0, %s154
      %s169 = sphi 0, %s155
      %s173 = sphi 0, %s173
      %s175 = sphi 0, %s173
      %s176 = sphi 0, %s175
      %s190 = sphi 0, %s176
      %s194 = sphi 0, %s194
      %s196 = sphi 0, %s194
      %s197 = sphi 0, %s196
      %s211 = sphi 0, %s197
      %s215 = sphi 0, %s215
      %s217 = sphi 0, %s215
      %s218 = sphi 0, %s217
      %s232 = sphi 0, %s218
      %s236 = sphi 0, %s236
      %s238 = sphi 0, %s236
      %s239 = sphi 0, %s238
      %s253 = sphi 0, %s239
      %s257 = sphi 0, %s257
      %s259 = sphi 0, %s257
      %s260 = sphi 0, %s259
      %s274 = sphi 0, %s260
      %s284 = sphi 0, %s286
      %s287 = sphi 0, %s284
      %s288 = sphi 0, %s287
      %s304 = sphi 0, %s288
    $region4: #{tpu_custom_call.1} parent=1 // loop_header_branch
      %30 = sbr.rel (%p28) target = $region8
    $region5: #{tpu_custom_call.1} parent=1 // loop_body
      %s32 = ssub.s32 %s27, 1
      %s33 = ssub.s32 %s27, 2
      %s43 = sadd.s32 1, %s36
      %p44 = scmp.ge.s32.totalorder %s43, 1
      %s45 = scalar_select %p44, 0, %s43
      %s46 = sadd.s32 1, %s35
      %s47 = scalar_select %p44, %s46, %s35
      %p48 = scmp.ge.s32.totalorder %s47, 2
      %s49 = scalar_select %p48, 0, %s47
      %s50 = sadd.s32 1, %s34
      %s51 = scalar_select %p48, %s50, %s34
      %p52 = scmp.ge.s32.totalorder %s51, 1
      %s53 = scalar_select %p52, 0, %s51
      %s54 = ssub.s32 %s35, %s49
      %p55 = scmp.eq.s32.totalorder %s54, 0
      %s57 = sadd.s32 %s56, 1
      %s58 = scalar_select %p55, %s56, %s57
      %p61 = pneg %p55
      %p62 = scmp.eq.s32.totalorder %s27, 1
      %p63 = por %p61, %p62
      %p64 = scmp.ne.s32.totalorder %s56, %s59
      %p65 = scmp.eq.s32.totalorder %s27, 0
      %p66 = por %p64, %p65
      %p67 = scmp.ne.s32.totalorder %s56, %s59
      %p68 = scmp.eq.s32.totalorder %s32, 1
      %p69 = por %p67, %p68
      %p70 = scmp.ne.s32.totalorder %s59, %s60
      %p71 = scmp.eq.s32.totalorder %s32, 0
      %p72 = por %p70, %p71
      %p73 = scmp.ne.s32.totalorder %s59, %s60
      %p74 = scmp.eq.s32.totalorder %s33, 1
      %p75 = por %p73, %p74
      %p77 = scmp.ne.s32.totalorder %s60, %s76
      %p78 = scmp.eq.s32.totalorder %s33, 0
      %p79 = por %p77, %p78
      %s80 = sadd.s32 %s34, %s36
      %s81 = sadd.s32 %s53, %s45
      %s82 = ssub.s32 %s35, %s49
      %s83 = ssub.s32 %s80, %s81
      %s84 = sor.u32 %s82, %s83
      %p85 = scmp.eq.s32.totalorder %s84, 0
      %s87 = sadd.s32 %s86, 1
      %s88 = scalar_select %p85, %s86, %s87
      %p91 = pneg %p85
      %p92 = scmp.eq.s32.totalorder %s27, 1
      %p93 = por %p91, %p92
      %p94 = scmp.ne.s32.totalorder %s86, %s89
      %p95 = scmp.eq.s32.totalorder %s27, 0
      %p96 = por %p94, %p95
      %p97 = scmp.ne.s32.totalorder %s86, %s89
      %p98 = scmp.eq.s32.totalorder %s32, 1
      %p99 = por %p97, %p98
      %p100 = scmp.ne.s32.totalorder %s89, %s90
      %p101 = scmp.eq.s32.totalorder %s32, 0
      %p102 = por %p100, %p101
      %p103 = scmp.ne.s32.totalorder %s89, %s90
      %p104 = scmp.eq.s32.totalorder %s33, 1
      %p105 = por %p103, %p104
      %p107 = scmp.ne.s32.totalorder %s90, %s106
      %p108 = scmp.eq.s32.totalorder %s33, 0
      %p109 = por %p107, %p108
      %s111 = sadd.s32 %s110, 1
      %p114 = scmp.eq.s32.totalorder %s27, 1
      %p115 = scmp.ne.s32.totalorder %s110, %s112
      %p116 = scmp.eq.s32.totalorder %s27, 0
      %p117 = por %p115, %p116
      %p118 = scmp.ne.s32.totalorder %s110, %s112
      %p119 = scmp.eq.s32.totalorder %s32, 1
      %p120 = por %p118, %p119
      %p121 = scmp.ne.s32.totalorder %s112, %s113
      %p122 = scmp.eq.s32.totalorder %s32, 0
      %p123 = por %p121, %p122
      %p124 = scmp.ne.s32.totalorder %s112, %s113
      %p125 = scmp.eq.s32.totalorder %s33, 1
      %p126 = por %p124, %p125
      %p128 = scmp.ne.s32.totalorder %s113, %s127
      %p129 = scmp.eq.s32.totalorder %s33, 0
      %p130 = por %p128, %p129
      %s132 = sadd.s32 %s131, 1
      %p135 = scmp.eq.s32.totalorder %s27, 1
      %p136 = scmp.ne.s32.totalorder %s131, %s133
      %p137 = scmp.eq.s32.totalorder %s27, 0
      %p138 = por %p136, %p137
      %p139 = scmp.ne.s32.totalorder %s131, %s133
      %p140 = scmp.eq.s32.totalorder %s32, 1
      %p141 = por %p139, %p140
      %p142 = scmp.ne.s32.totalorder %s133, %s134
      %p143 = scmp.eq.s32.totalorder %s32, 0
      %p144 = por %p142, %p143
      %p145 = scmp.ne.s32.totalorder %s133, %s134
      %p146 = scmp.eq.s32.totalorder %s33, 1
      %p147 = por %p145, %p146
      %p149 = scmp.ne.s32.totalorder %s134, %s148
      %p150 = scmp.eq.s32.totalorder %s33, 0
      %p151 = por %p149, %p150
      %s153 = sadd.s32 %s152, 1
      %p156 = scmp.eq.s32.totalorder %s27, 1
      %p157 = scmp.ne.s32.totalorder %s152, %s154
      %p158 = scmp.eq.s32.totalorder %s27, 0
      %p159 = por %p157, %p158
      %p160 = scmp.ne.s32.totalorder %s152, %s154
      %p161 = scmp.eq.s32.totalorder %s32, 1
      %p162 = por %p160, %p161
      %p163 = scmp.ne.s32.totalorder %s154, %s155
      %p164 = scmp.eq.s32.totalorder %s32, 0
      %p165 = por %p163, %p164
      %p166 = scmp.ne.s32.totalorder %s154, %s155
      %p167 = scmp.eq.s32.totalorder %s33, 1
      %p168 = por %p166, %p167
      %p170 = scmp.ne.s32.totalorder %s155, %s169
      %p171 = scmp.eq.s32.totalorder %s33, 0
      %p172 = por %p170, %p171
      %s174 = sadd.s32 %s173, 1
      %p177 = scmp.eq.s32.totalorder %s27, 1
      %p178 = scmp.ne.s32.totalorder %s173, %s175
      %p179 = scmp.eq.s32.totalorder %s27, 0
      %p180 = por %p178, %p179
      %p181 = scmp.ne.s32.totalorder %s173, %s175
      %p182 = scmp.eq.s32.totalorder %s32, 1
      %p183 = por %p181, %p182
      %p184 = scmp.ne.s32.totalorder %s175, %s176
      %p185 = scmp.eq.s32.totalorder %s32, 0
      %p186 = por %p184, %p185
      %p187 = scmp.ne.s32.totalorder %s175, %s176
      %p188 = scmp.eq.s32.totalorder %s33, 1
      %p189 = por %p187, %p188
      %p191 = scmp.ne.s32.totalorder %s176, %s190
      %p192 = scmp.eq.s32.totalorder %s33, 0
      %p193 = por %p191, %p192
      %s195 = sadd.s32 %s194, 1
      %p198 = scmp.eq.s32.totalorder %s27, 1
      %p199 = scmp.ne.s32.totalorder %s194, %s196
      %p200 = scmp.eq.s32.totalorder %s27, 0
      %p201 = por %p199, %p200
      %p202 = scmp.ne.s32.totalorder %s194, %s196
      %p203 = scmp.eq.s32.totalorder %s32, 1
      %p204 = por %p202, %p203
      %p205 = scmp.ne.s32.totalorder %s196, %s197
      %p206 = scmp.eq.s32.totalorder %s32, 0
      %p207 = por %p205, %p206
      %p208 = scmp.ne.s32.totalorder %s196, %s197
      %p209 = scmp.eq.s32.totalorder %s33, 1
      %p210 = por %p208, %p209
      %p212 = scmp.ne.s32.totalorder %s197, %s211
      %p213 = scmp.eq.s32.totalorder %s33, 0
      %p214 = por %p212, %p213
      %s216 = sadd.s32 %s215, 1
      %p219 = scmp.eq.s32.totalorder %s27, 1
      %p220 = scmp.ne.s32.totalorder %s215, %s217
      %p221 = scmp.eq.s32.totalorder %s27, 0
      %p222 = por %p220, %p221
      %p223 = scmp.ne.s32.totalorder %s215, %s217
      %p224 = scmp.eq.s32.totalorder %s32, 1
      %p225 = por %p223, %p224
      %p226 = scmp.ne.s32.totalorder %s217, %s218
      %p227 = scmp.eq.s32.totalorder %s32, 0
      %p228 = por %p226, %p227
      %p229 = scmp.ne.s32.totalorder %s217, %s218
      %p230 = scmp.eq.s32.totalorder %s33, 1
      %p231 = por %p229, %p230
      %p233 = scmp.ne.s32.totalorder %s218, %s232
      %p234 = scmp.eq.s32.totalorder %s33, 0
      %p235 = por %p233, %p234
      %s237 = sadd.s32 %s236, 1
      %p240 = scmp.eq.s32.totalorder %s27, 1
      %p241 = scmp.ne.s32.totalorder %s236, %s238
      %p242 = scmp.eq.s32.totalorder %s27, 0
      %p243 = por %p241, %p242
      %p244 = scmp.ne.s32.totalorder %s236, %s238
      %p245 = scmp.eq.s32.totalorder %s32, 1
      %p246 = por %p244, %p245
      %p247 = scmp.ne.s32.totalorder %s238, %s239
      %p248 = scmp.eq.s32.totalorder %s32, 0
      %p249 = por %p247, %p248
      %p250 = scmp.ne.s32.totalorder %s238, %s239
      %p251 = scmp.eq.s32.totalorder %s33, 1
      %p252 = por %p250, %p251
      %p254 = scmp.ne.s32.totalorder %s239, %s253
      %p255 = scmp.eq.s32.totalorder %s33, 0
      %p256 = por %p254, %p255
      %s258 = sadd.s32 %s257, 1
      %p261 = scmp.eq.s32.totalorder %s27, 1
      %p262 = scmp.ne.s32.totalorder %s257, %s259
      %p263 = scmp.eq.s32.totalorder %s27, 0
      %p264 = por %p262, %p263
      %p265 = scmp.ne.s32.totalorder %s257, %s259
      %p266 = scmp.eq.s32.totalorder %s32, 1
      %p267 = por %p265, %p266
      %p268 = scmp.ne.s32.totalorder %s259, %s260
      %p269 = scmp.eq.s32.totalorder %s32, 0
      %p270 = por %p268, %p269
      %p271 = scmp.ne.s32.totalorder %s259, %s260
      %p272 = scmp.eq.s32.totalorder %s33, 1
      %p273 = por %p271, %p272
      %p275 = scmp.ne.s32.totalorder %s260, %s274
      %p276 = scmp.eq.s32.totalorder %s33, 0
      %p277 = por %p275, %p276
      %s278 = sadd.s32 %s34, %s36
      %s279 = sadd.s32 %s53, %s45
      %s280 = ssub.s32 %s35, %s49
      %s281 = ssub.s32 %s278, %s279
      %s282 = sor.u32 %s280, %s281
      %p283 = scmp.eq.s32.totalorder %s282, 0
      %s285 = sadd.s32 %s284, 1
      %s286 = scalar_select %p283, %s284, %s285
      %p289 = pneg %p283
      %p290 = scmp.eq.s32.totalorder %s27, 1
      %p291 = por %p289, %p290
      %p292 = scmp.ne.s32.totalorder %s284, %s287
      %p293 = scmp.eq.s32.totalorder %s27, 0
      %p294 = por %p292, %p293
      %p295 = scmp.ne.s32.totalorder %s284, %s287
      %p296 = scmp.eq.s32.totalorder %s32, 1
      %p297 = por %p295, %p296
      %p298 = scmp.ne.s32.totalorder %s287, %s288
      %p299 = scmp.eq.s32.totalorder %s32, 0
      %p300 = por %p298, %p299
      %p301 = scmp.ne.s32.totalorder %s287, %s288
      %p302 = scmp.eq.s32.totalorder %s33, 1
      %p303 = por %p301, %p302
      %p305 = scmp.ne.s32.totalorder %s288, %s304
      %p306 = scmp.eq.s32.totalorder %s33, 0
      %p307 = por %p305, %p306
      %p308 = scmp.le.s32.totalorder 1, %s27
      %p309 = scmp.lt.s32.totalorder %s27, 3
      %p310 = pnand %p308, %p309
      %p311 = pneg %p310
      // Predicated region
      $region9: #{tpu_custom_call.1} parent=5 // pred_check
        _
      $region10: #{tpu_custom_call.1} parent=5 // pred_check_branch
        %313 = sbr.rel (%p310) target = $region12
      $region11: #{tpu_custom_call.1} parent=5 // pred_region
        %s314 = ssub.s32 %s27, 1
        // Predicated region
        $region13: #{tpu_custom_call.1} parent=11 // pred_check
          %p315 = pneg %p123
        $region14: #{tpu_custom_call.1} parent=11 // pred_check_branch
          %317 = sbr.rel (%p315) target = $region16
        $region15: #{tpu_custom_call.1} parent=11 // pred_region
          %319 = vsyncadd [#allocation10], 0
          %s320 = sshll.u32 %s2, 4
          %s321 = int_to_ptr.hbm [resolvable:$true] %s320
          %s322 = sshll.u32 [#allocation11], 4
          %s323 = int_to_ptr.vmem [resolvable:$true] %s322
          %328 = dma.hbm_to_vmem [thread:$0]  %s321, 256, %s323, [#allocation10], 128, 128, 8
        $region16: #{tpu_custom_call.1} parent=11 // pred_fallthru
          _
        // Predicated region
        $region17: #{tpu_custom_call.1} parent=11 // pred_check
          %p329 = pneg %p144
        $region18: #{tpu_custom_call.1} parent=11 // pred_check_branch
          %331 = sbr.rel (%p329) target = $region20
        $region19: #{tpu_custom_call.1} parent=11 // pred_region
          _
        $region20: #{tpu_custom_call.1} parent=11 // pred_fallthru
          _
        // Predicated region
        $region21: #{tpu_custom_call.1} parent=11 // pred_check
          %p332 = pneg %p165
        $region22: #{tpu_custom_call.1} parent=11 // pred_check_branch
          %334 = sbr.rel (%p332) target = $region24
        $region23: #{tpu_custom_call.1} parent=11 // pred_region
          %336 = vsyncadd [#allocation13], 0
          %s337 = sshll.u32 %s4, 4
          %s338 = int_to_ptr.hbm [resolvable:$true] %s337
          %s339 = sshll.u32 [#allocation12], 4
          %s340 = int_to_ptr.vmem [resolvable:$true] %s339
          %345 = dma.hbm_to_vmem [thread:$0]  %s338, 512, %s340, [#allocation13], 128, 128, 8
        $region24: #{tpu_custom_call.1} parent=11 // pred_fallthru
          _
        // Predicated region
        $region25: #{tpu_custom_call.1} parent=11 // pred_check
          %p346 = pneg %p186
        $region26: #{tpu_custom_call.1} parent=11 // pred_check_branch
          %348 = sbr.rel (%p346) target = $region28
        $region27: #{tpu_custom_call.1} parent=11 // pred_region
          _
        $region28: #{tpu_custom_call.1} parent=11 // pred_fallthru
          _
        // Predicated region
        $region29: #{tpu_custom_call.1} parent=11 // pred_check
          %p349 = pneg %p207
        $region30: #{tpu_custom_call.1} parent=11 // pred_check_branch
          %351 = sbr.rel (%p349) target = $region32
        $region31: #{tpu_custom_call.1} parent=11 // pred_region
          %353 = vsyncadd [#allocation13], 0
          %s354 = sshll.u32 %s6, 4
          %s355 = int_to_ptr.hbm [resolvable:$true] %s354
          %s356 = sshll.u32 [#allocation14], 4
          %s357 = int_to_ptr.vmem [resolvable:$true] %s356
          %362 = dma.hbm_to_vmem [thread:$0]  %s355, 512, %s357, [#allocation13], 128, 128, 8
        $region32: #{tpu_custom_call.1} parent=11 // pred_fallthru
          _
        // Predicated region
        $region33: #{tpu_custom_call.1} parent=11 // pred_check
          %p363 = pneg %p228
        $region34: #{tpu_custom_call.1} parent=11 // pred_check_branch
          %365 = sbr.rel (%p363) target = $region36
        $region35: #{tpu_custom_call.1} parent=11 // pred_region
          _
        $region36: #{tpu_custom_call.1} parent=11 // pred_fallthru
          _
        // Predicated region
        $region37: #{tpu_custom_call.1} parent=11 // pred_check
          %p366 = pneg %p249
        $region38: #{tpu_custom_call.1} parent=11 // pred_check_branch
          %368 = sbr.rel (%p366) target = $region40
        $region39: #{tpu_custom_call.1} parent=11 // pred_region
          %370 = vsyncadd [#allocation16], 0
          %s371 = sshll.u32 %s8, 4
          %s372 = int_to_ptr.hbm [resolvable:$true] %s371
          %s373 = sshll.u32 [#allocation15], 4
          %s374 = int_to_ptr.vmem [resolvable:$true] %s373
          %379 = dma.hbm_to_vmem [thread:$0]  %s372, 512, %s374, [#allocation16], 128, 128, 8
        $region40: #{tpu_custom_call.1} parent=11 // pred_fallthru
          _
        // Predicated region
        $region41: #{tpu_custom_call.1} parent=11 // pred_check
          %p380 = pneg %p270
        $region42: #{tpu_custom_call.1} parent=11 // pred_check_branch
          %382 = sbr.rel (%p380) target = $region44
        $region43: #{tpu_custom_call.1} parent=11 // pred_region
          _
        $region44: #{tpu_custom_call.1} parent=11 // pred_fallthru
          _
      $region12: #{tpu_custom_call.1} parent=5 // pred_fallthru
        _
      %p383 = scmp.lt.s32.totalorder %s27, 2
      // Predicated region
      $region45: #{tpu_custom_call.1} parent=5 // pred_check
        %p384 = pneg %p383
      $region46: #{tpu_custom_call.1} parent=5 // pred_check_branch
        %386 = sbr.rel (%p384) target = $region48
      $region47: #{tpu_custom_call.1} parent=5 // pred_region
        // Predicated region
        $region49: #{tpu_custom_call.1} parent=47 // pred_check
          %p387 = pneg %p66
        $region50: #{tpu_custom_call.1} parent=47 // pred_check_branch
          %389 = sbr.rel (%p387) target = $region52
        $region51: #{tpu_custom_call.1} parent=47 // pred_region
          %s390 = sand.u32 %s56, 1
          %s391 = scalar_lea.sflag [#allocation7], %s390
          %s392 = sand.u32 %s56, 1
          %s393 = smul.addr %s392, 8
          %s394 = scalar_lea.vmem [#allocation6], %s393
          %396 = vsyncadd %s391, 0
          %s397 = smul.addr %s35, 8
          %s398 = scalar_lea.hbm %s0, %s397
          %s400 = sshll.u32 %s398, 4
          %s401 = int_to_ptr.hbm [resolvable:$true] %s400
          %s402 = sshll.u32 %s394, 4
          %s403 = int_to_ptr.vmem [resolvable:$true] %s402
          %405 = dma.hbm_to_vmem [thread:$0]  %s401, 128, %s403, %s391
        $region52: #{tpu_custom_call.1} parent=47 // pred_fallthru
          _
        // Predicated region
        $region53: #{tpu_custom_call.1} parent=47 // pred_check
          %p406 = pneg %p96
        $region54: #{tpu_custom_call.1} parent=47 // pred_check_branch
          %408 = sbr.rel (%p406) target = $region56
        $region55: #{tpu_custom_call.1} parent=47 // pred_region
          %s409 = sand.u32 %s27, 1
          %s410 = scalar_lea.sflag [#allocation10], %s409
          %s411 = sand.u32 %s86, 1
          %s412 = smul.addr %s411, 8
          %s413 = scalar_lea.vmem [#allocation9], %s412
          %s414 = sadd.s32 %s34, %s36
          %416 = vsyncadd %s410, 0
          %s417 = sadd.s32 %s414, %s35
          %s418 = smul.addr %s417, 8
          %s419 = scalar_lea.hbm %s1, %s418
          %s421 = sshll.u32 %s419, 4
          %s422 = int_to_ptr.hbm [resolvable:$true] %s421
          %s423 = sshll.u32 %s413, 4
          %s424 = int_to_ptr.vmem [resolvable:$true] %s423
          %426 = dma.hbm_to_vmem [thread:$0]  %s422, 128, %s424, %s410
        $region56: #{tpu_custom_call.1} parent=47 // pred_fallthru
          _
      $region48: #{tpu_custom_call.1} parent=5 // pred_fallthru
        _
      %p427 = scmp.le.s32.totalorder 1, %s27
      %p428 = scmp.lt.s32.totalorder %s27, 3
      %p429 = pnand %p427, %p428
      %p430 = pneg %p429
      // Predicated region
      $region57: #{tpu_custom_call.1} parent=5 // pred_check
        _
      $region58: #{tpu_custom_call.1} parent=5 // pred_check_branch
        %432 = sbr.rel (%p429) target = $region60
      $region59: #{tpu_custom_call.1} parent=5 // pred_region
        %s433 = ssub.s32 %s27, 1
        %s434 = sand.u32 %s59, 1
        %s435 = scalar_lea.sflag [#allocation7], %s434
        %s436 = sand.u32 %s59, 1
        %s437 = smul.addr %s436, 8
        %s438 = scalar_lea.vmem [#allocation6], %s437
        // Predicated region
        $region61: #{tpu_custom_call.1} parent=59 // pred_check
          %p439 = pneg %p72
        $region62: #{tpu_custom_call.1} parent=59 // pred_check_branch
          %441 = sbr.rel (%p439) target = $region64
        $region63: #{tpu_custom_call.1} parent=59 // pred_region
          %443 = dma.done %s435, 128
        $region64: #{tpu_custom_call.1} parent=59 // pred_fallthru
          _
        %s444 = sand.u32 %s32, 1
        %s445 = scalar_lea.sflag [#allocation10], %s444
        %s446 = sand.u32 %s89, 1
        %s447 = smul.addr %s446, 8
        %s448 = scalar_lea.vmem [#allocation9], %s447
        // Predicated region
        $region65: #{tpu_custom_call.1} parent=59 // pred_check
          %p449 = pneg %p102
        $region66: #{tpu_custom_call.1} parent=59 // pred_check_branch
          %451 = sbr.rel (%p449) target = $region68
        $region67: #{tpu_custom_call.1} parent=59 // pred_region
          %453 = dma.done %s445, 128
        $region68: #{tpu_custom_call.1} parent=59 // pred_fallthru
          _
        // Predicated region
        $region69: #{tpu_custom_call.1} parent=59 // pred_check
          %p454 = pneg %p123
        $region70: #{tpu_custom_call.1} parent=59 // pred_check_branch
          %456 = sbr.rel (%p454) target = $region72
        $region71: #{tpu_custom_call.1} parent=59 // pred_region
          %458 = dma.done [#allocation10], 256
        $region72: #{tpu_custom_call.1} parent=59 // pred_fallthru
          _
        // Predicated region
        $region73: #{tpu_custom_call.1} parent=59 // pred_check
          %p459 = pneg %p165
        $region74: #{tpu_custom_call.1} parent=59 // pred_check_branch
          %461 = sbr.rel (%p459) target = $region76
        $region75: #{tpu_custom_call.1} parent=59 // pred_region
          %463 = dma.done [#allocation13], 512
        $region76: #{tpu_custom_call.1} parent=59 // pred_fallthru
          _
        // Predicated region
        $region77: #{tpu_custom_call.1} parent=59 // pred_check
          %p464 = pneg %p207
        $region78: #{tpu_custom_call.1} parent=59 // pred_check_branch
          %466 = sbr.rel (%p464) target = $region80
        $region79: #{tpu_custom_call.1} parent=59 // pred_region
          %468 = dma.done [#allocation13], 512
        $region80: #{tpu_custom_call.1} parent=59 // pred_fallthru
          _
        // Predicated region
        $region81: #{tpu_custom_call.1} parent=59 // pred_check
          %p469 = pneg %p249
        $region82: #{tpu_custom_call.1} parent=59 // pred_check_branch
          %471 = sbr.rel (%p469) target = $region84
        $region83: #{tpu_custom_call.1} parent=59 // pred_region
          %473 = dma.done [#allocation16], 512
        $region84: #{tpu_custom_call.1} parent=59 // pred_fallthru
          _
        %s474 = sand.u32 %s59, 1
        %s475 = scalar_lea.sflag [#allocation7], %s474
        %s476 = sand.u32 %s59, 1
        %s477 = smul.addr %s476, 8
        %s478 = scalar_lea.vmem [#allocation6], %s477
        %p479 = pneg %p72
        %p480 = pneg %p69
        %s481 = sand.u32 %s32, 1
        %s482 = scalar_lea.sflag [#allocation10], %s481
        %s483 = sand.u32 %s89, 1
        %s484 = smul.addr %s483, 8
        %s485 = scalar_lea.vmem [#allocation9], %s484
        %p486 = pneg %p102
        %p487 = pneg %p99
        %p488 = pneg %p123
        %p489 = pneg %p120
        %p490 = pneg %p144
        %p491 = pneg %p141
        %p492 = pneg %p165
        %p493 = pneg %p162
        %p494 = pneg %p186
        %p495 = pneg %p183
        %p496 = pneg %p207
        %p497 = pneg %p204
        %p498 = pneg %p228
        %p499 = pneg %p225
        %p500 = pneg %p249
        %p501 = pneg %p246
        %p502 = pneg %p270
        %p503 = pneg %p267
        %p504 = pneg %p300
        %p505 = pneg %p297
        %s506 = sand.u32 %s287, 1
        %s507 = scalar_lea.sflag [#allocation8], %s506
        %s508 = sand.u32 %s287, 1
        %s509 = smul.addr %s508, 8
        %s510 = scalar_lea.vmem [#allocation17], %s509
        %s511 = sadd.s32 %s37, %s39
        %s512 = sadd.s32 %s37, %s39
        %p513 = scmp.eq.s32.totalorder %s39, 0
        // Predicated region
        $region85: #{tpu_custom_call.1} parent=59 // pred_check
          %p514 = pneg %p513
        $region86: #{tpu_custom_call.1} parent=59 // pred_check_branch
          %516 = sbr.rel (%p514) target = $region88
        $region87: #{tpu_custom_call.1} parent=59 // pred_region
          %v517 = vld [vmem:[%s438] sm:$0xff]
          %v518 = vld [vmem:[#allocation14] sm:$0xff]
          %v519 = vld [vmem:[#allocation14 + $0x8] sm:$0xff]
          %v520 = vld [vmem:[#allocation14 + $0x10] sm:$0xff]
          %v521 = vld [vmem:[#allocation14 + $0x18] sm:$0xff]
          %v522 = vld [vmem:[%s7] sm:$0x1]
          %v524 = vperm.slane %v522, 0
          %vm526 = vcmask 261120
          %v528 = vsel %vm526, %v517, 0
          %530 = vmatpush.msra.mxu0 0.0
          %531 = vmatpush.msra.mxu0 0.0
          %532 = vmatpush.msra.mxu0 0.0
          %533 = vmatpush.msra.mxu0 0.0
          %534 = vmatpush.msra.mxu0 0.0
          %535 = vmatpush.msra.mxu0 0.0
          %536 = vmatpush.msra.mxu0 0.0
          %537 = vmatpush.msra.mxu0 0.0
          %538 = vmatpush.msra.mxu0 0.0
          %539 = vmatpush.msra.mxu0 0.0
          %540 = vmatpush.msra.mxu0 0.0
          %541 = vmatpush.msra.mxu0 0.0
          %542 = vmatpush.msra.mxu0 %v521
          %543 = vmatpush.msra.mxu0 %v520
          %544 = vmatpush.msra.mxu0 %v519
          %545 = vmatpush.msra.mxu0 %v518
          %546 = vmatmul.f32.gmra.mxu0 %v528
          %v547 = vpop.f32.mrf.mxu0
          %v548 = vadd.f32 %v524, %v547
          %549 = vdwg.mxu0
          %vm550 = vcmask 64512
          %551 = vst.msk [vmem:[#allocation2] sm:$0xff] %vm550, %v548
          %553 = vrot.lane.b32.xlu0 %v548, 96
          %v554 = vpop.permute.xlu0 %553
          %556 = vst.msk [vmem:[#allocation3] sm:$0xff] %vm550, %v554
          %557 = vrot.lane.b32.xlu0 %v548, 120
          %v558 = vpop.permute.xlu0 %557
          %s560 = scalar_lea.vmem [#allocation2], 8
          %561 = vst.msk [vmem:[%s560] sm:$0xff] %vm550, %v558
          %562 = vrot.lane.b32.xlu0 %v548, 88
          %v563 = vpop.permute.xlu0 %562
          %s565 = scalar_lea.vmem [#allocation3], 8
          %566 = vst.msk [vmem:[%s565] sm:$0xff] %vm550, %v563
          %567 = vrot.lane.b32.xlu0 %v548, 112
          %v568 = vpop.permute.xlu0 %567
          %s570 = scalar_lea.vmem [#allocation2], 16
          %571 = vst.msk [vmem:[%s570] sm:$0xff] %vm550, %v568
          %572 = vrot.lane.b32.xlu0 %v548, 80
          %v573 = vpop.permute.xlu0 %572
          %s575 = scalar_lea.vmem [#allocation3], 16
          %576 = vst.msk [vmem:[%s575] sm:$0xff] %vm550, %v573
          %577 = vrot.lane.b32.xlu0 %v548, 104
          %v578 = vpop.permute.xlu0 %577
          %s580 = scalar_lea.vmem [#allocation2], 24
          %581 = vst.msk [vmem:[%s580] sm:$0xff] %vm550, %v578
          %582 = vrot.lane.b32.xlu0 %v548, 72
          %v583 = vpop.permute.xlu0 %582
          %s585 = scalar_lea.vmem [#allocation3], 24
          %586 = vst.msk [vmem:[%s585] sm:$0xff] %vm550, %v583
        $region88: #{tpu_custom_call.1} parent=59 // pred_fallthru
          _
        %s587 = sadd.s32 %s37, %s39
        %s588 = smul.u32 %s587, 8
        %s589 = scalar_lea.vmem %s438, %s588 [#allocation6]
        %v590 = vld [vmem:[%s589] sm:$0xff]
        %v591 = vld [vmem:[%s448] sm:$0xff]
        %v592 = vld [vmem:[#allocation11] sm:$0xff]
        %v593 = vld [vmem:[#allocation11 + $0x8] sm:$0xff]
        %v594 = vld [vmem:[%s3] sm:$0x1]
        %v596 = vperm.slane %v594, 0
        %vm598 = vcmask 130048
        %v600 = vsel %vm598, %v591, 0
        %602 = vmatpush.msra.mxu0 0.0
        %603 = vmatpush.msra.mxu0 0.0
        %604 = vmatpush.msra.mxu0 0.0
        %605 = vmatpush.msra.mxu0 0.0
        %606 = vmatpush.msra.mxu0 0.0
        %607 = vmatpush.msra.mxu0 0.0
        %608 = vmatpush.msra.mxu0 0.0
        %609 = vmatpush.msra.mxu0 0.0
        %610 = vmatpush.msra.mxu0 0.0
        %611 = vmatpush.msra.mxu0 0.0
        %612 = vmatpush.msra.mxu0 0.0
        %613 = vmatpush.msra.mxu0 0.0
        %614 = vmatpush.msra.mxu0 0.0
        %615 = vmatpush.msra.mxu0 0.0
        %616 = vmatpush.msra.mxu0 %v593
        %617 = vmatpush.msra.mxu0 %v592
        %618 = vmatmul.f32.gmra.mxu0 %v600
        %v619 = vpop.f32.mrf.mxu0
        %v620 = vadd.f32 %v596, %v619
        %621 = vdwg.mxu0
        %v622 = vxor.u32 %v620, 2147483648
        %v623 = vmul.f32 %v622, 1.442695
        %v624 = vpow.pop %v623
        %v625 = vadd.f32 %v624, 1.0
        %v626 = vrcp.pop %v625
        %v627 = vmul.f32 %v625, %v626
        %v628 = vsub.f32 1.0, %v627
        %v629 = vmul.f32 %v626, %v628
        %v630 = vadd.f32 %v626, %v629
        %vm631 = vweird.f32 %v625
        %vm632 = vweird.f32 %v626
        %vm633 = vmor %vm631, %vm632
        %v634 = vsel %vm633, %v626, %v630
        %v635 = vand.u32 2147483647, %v625
        %vm636 = vcmp.eq.f32.partialorder %v635, 8.507059e+37
        %v637 = vand.u32 %v625, 2147483648
        %v638 = vor.u32 1.1754944e-38, %v637
        %v639 = vsel %vm636, %v638, %v634
        %v640 = vmul.f32 1.0, %v639
        %v641 = vld [vmem:[#allocation12] sm:$0xff]
        %v642 = vld [vmem:[#allocation12 + $0x8] sm:$0xff]
        %v643 = vld [vmem:[#allocation12 + $0x10] sm:$0xff]
        %v644 = vld [vmem:[#allocation12 + $0x18] sm:$0xff]
        %v645 = vld [vmem:[%s5] sm:$0x1]
        %v647 = vperm.slane %v645, 0
        %vm649 = vcmask 261120
        %v651 = vsel %vm649, %v620, 0
        %653 = vmatpush.msra.mxu0 0.0
        %654 = vmatpush.msra.mxu0 0.0
        %655 = vmatpush.msra.mxu0 0.0
        %656 = vmatpush.msra.mxu0 0.0
        %657 = vmatpush.msra.mxu0 0.0
        %658 = vmatpush.msra.mxu0 0.0
        %659 = vmatpush.msra.mxu0 0.0
        %660 = vmatpush.msra.mxu0 0.0
        %661 = vmatpush.msra.mxu0 0.0
        %662 = vmatpush.msra.mxu0 0.0
        %663 = vmatpush.msra.mxu0 0.0
        %664 = vmatpush.msra.mxu0 0.0
        %665 = vmatpush.msra.mxu0 %v644
        %666 = vmatpush.msra.mxu0 %v643
        %667 = vmatpush.msra.mxu0 %v642
        %668 = vmatpush.msra.mxu0 %v641
        %669 = vmatmul.f32.gmra.mxu0 %v651
        %v670 = vpop.f32.mrf.mxu0
        %v671 = vadd.f32 %v647, %v670
        %672 = vdwg.mxu0
        %vm673 = vcmask 64512
        %674 = vst.msk [vmem:[#allocation4] sm:$0xff] %vm673, %v671
        %676 = vrot.lane.b32.xlu0 %v671, 120
        %v677 = vpop.permute.xlu0 %676
        %s679 = scalar_lea.vmem [#allocation4], 8
        %680 = vst.msk [vmem:[%s679] sm:$0xff] %vm673, %v677
        %681 = vrot.lane.b32.xlu0 %v671, 112
        %v682 = vpop.permute.xlu0 %681
        %s684 = scalar_lea.vmem [#allocation4], 16
        %685 = vst.msk [vmem:[%s684] sm:$0xff] %vm673, %v682
        %686 = vrot.lane.b32.xlu0 %v671, 104
        %v687 = vpop.permute.xlu0 %686
        %s689 = scalar_lea.vmem [#allocation4], 24
        %690 = vst.msk [vmem:[%s689] sm:$0xff] %vm673, %v687
        loop: start=0, step=1, limit=4
        $region89: #{tpu_custom_call.1} parent=59 // loop_pre_header
          _
        $region90: #{tpu_custom_call.1} parent=59 // loop_header
          %s692 = sphi 0, %s696
          %p693 = scmp.ge.s32.totalorder %s692, 4
        $region91: #{tpu_custom_call.1} parent=59 // loop_header_branch
          %695 = sbr.rel (%p693) target = $region95
        $region92: #{tpu_custom_call.1} parent=59 // loop_body
          %s697 = smul.u32 %s692, 8
          %s698 = scalar_lea.vmem [#allocation4], %s697
          %v699 = vld [vmem:[%s698] sm:$0xff]
          %s700 = scalar_lea.vmem [#allocation2], %s697
          %v701 = vld [vmem:[%s700] sm:$0xff]
          %s702 = scalar_lea.vmem [#allocation3], %s697
          %v703 = vld [vmem:[%s702] sm:$0xff]
          %v705 = vsel %vm673, %v699, 0
          %v708 = vsel %vm673, %v701, 0
          %710 = vmatpush.xpose.msra.mxu0 0.0
          %711 = vmatpush.xpose.msra.mxu0 0.0
          %712 = vmatpush.xpose.msra.mxu0 0.0
          %713 = vmatpush.xpose.msra.mxu0 0.0
          %714 = vmatpush.xpose.msra.mxu0 0.0
          %715 = vmatpush.xpose.msra.mxu0 0.0
          %716 = vmatpush.xpose.msra.mxu0 0.0
          %717 = vmatpush.xpose.msra.mxu0 0.0
          %718 = vmatpush.xpose.msra.mxu0 0.0
          %719 = vmatpush.xpose.msra.mxu0 0.0
          %720 = vmatpush.xpose.msra.mxu0 0.0
          %721 = vmatpush.xpose.msra.mxu0 0.0
          %722 = vmatpush.xpose.msra.mxu0 0.0
          %723 = vmatpush.xpose.msra.mxu0 0.0
          %724 = vmatpush.xpose.msra.mxu0 0.0
          %725 = vmatpush.xpose.msra.mxu0 %v708
          %726 = vmatmul.f32.gmra.mxu0 %v705
          %v727 = vpop.f32.mrf.mxu0
          %v728 = vadd.f32 0.0, %v727
          %729 = vdwg.mxu0
          %v730 = vmul.f32 %v728, 0.35355338
          %v731 = vsel %vm673, %v730, -inf
          %732 = vmax.xlane.f32.xlu0 %v731
          %v733 = vpop.xlane.xlu0 %732
          %v734 = vsub.f32 %v730, %v733
          %v735 = vmul.f32 %v734, 1.442695
          %v736 = vpow.pop %v735
          %v737 = vsel %vm673, %v736, 0.0
          %738 = vadd.xlane.f32.xlu0 %v737
          %v739 = vpop.xlane.xlu0 %738
          %v740 = vrcp.pop %v739
          %v741 = vmul.f32 %v736, %v740
          %v743 = vsel %vm673, %v741, 0
          %745 = vmatpush.msra.mxu0 0.0
          %746 = vmatpush.msra.mxu0 0.0
          %747 = vmatpush.msra.mxu0 0.0
          %748 = vmatpush.msra.mxu0 0.0
          %749 = vmatpush.msra.mxu0 0.0
          %750 = vmatpush.msra.mxu0 0.0
          %751 = vmatpush.msra.mxu0 0.0
          %752 = vmatpush.msra.mxu0 0.0
          %753 = vmatpush.msra.mxu0 0.0
          %754 = vmatpush.msra.mxu0 0.0
          %755 = vmatpush.msra.mxu0 0.0
          %756 = vmatpush.msra.mxu0 0.0
          %757 = vmatpush.msra.mxu0 0.0
          %758 = vmatpush.msra.mxu0 0.0
          %759 = vmatpush.msra.mxu0 0.0
          %760 = vmatpush.msra.mxu0 %v703
          %761 = vmatmul.f32.gmra.mxu0 %v743
          %v762 = vpop.f32.mrf.mxu0
          %v763 = vadd.f32 0.0, %v762
          %764 = vdwg.mxu0
          %s765 = scalar_lea.vmem [#allocation5], %s697
          %766 = vst.msk [vmem:[%s765] sm:$0xff] %vm673, %v763
        $region93: #{tpu_custom_call.1} parent=59 // loop_footer
          %s696 = sadd.s32 1, %s692
        $region94: #{tpu_custom_call.1} parent=59 // loop_footer_branch
          %691 = sbr.rel target = $region90
        $region95: #{tpu_custom_call.1} parent=59 // loop_exit
          _
        %v767 = vld [vmem:[#allocation5] sm:$0xff]
        %s768 = scalar_lea.vmem [#allocation5], 8
        %v769 = vld [vmem:[%s768] sm:$0xff]
        %s770 = scalar_lea.vmem [#allocation5], 16
        %v771 = vld [vmem:[%s770] sm:$0xff]
        %s772 = scalar_lea.vmem [#allocation5], 24
        %v773 = vld [vmem:[%s772] sm:$0xff]
        %775 = vrot.lane.b32.xlu0 %v769, 8
        %v776 = vpop.permute.xlu0 %775
        %779 = vrot.lane.b32.xlu0 %v771, 16
        %v780 = vpop.permute.xlu0 %779
        %783 = vrot.lane.b32.xlu0 %v773, 24
        %v784 = vpop.permute.xlu0 %783
        %v786 = vsel %vm673, %v767, %v776
        %v787 = vsel %vm598, %v786, %v780
        %vm788 = vcmask 195584
        %v789 = vsel %vm788, %v787, %v784
        %v790 = vld [vmem:[#allocation15] sm:$0xff]
        %v791 = vld [vmem:[#allocation15 + $0x8] sm:$0xff]
        %v792 = vld [vmem:[#allocation15 + $0x10] sm:$0xff]
        %v793 = vld [vmem:[#allocation15 + $0x18] sm:$0xff]
        %v794 = vld [vmem:[%s9] sm:$0x1]
        %v796 = vperm.slane %v794, 0
        %v799 = vsel %vm649, %v789, 0
        %801 = vmatpush.msra.mxu0 0.0
        %802 = vmatpush.msra.mxu0 0.0
        %803 = vmatpush.msra.mxu0 0.0
        %804 = vmatpush.msra.mxu0 0.0
        %805 = vmatpush.msra.mxu0 0.0
        %806 = vmatpush.msra.mxu0 0.0
        %807 = vmatpush.msra.mxu0 0.0
        %808 = vmatpush.msra.mxu0 0.0
        %809 = vmatpush.msra.mxu0 0.0
        %810 = vmatpush.msra.mxu0 0.0
        %811 = vmatpush.msra.mxu0 0.0
        %812 = vmatpush.msra.mxu0 0.0
        %813 = vmatpush.msra.mxu0 %v793
        %814 = vmatpush.msra.mxu0 %v792
        %815 = vmatpush.msra.mxu0 %v791
        %816 = vmatpush.msra.mxu0 %v790
        %817 = vmatmul.f32.gmra.mxu0 %v799
        %v818 = vpop.f32.mrf.mxu0
        %v819 = vadd.f32 %v796, %v818
        %820 = vdwg.mxu0
        %822 = vset.pattern.permute.xlu0 32
        %823 = vperm.xlu0 %822, %v640
        %v824 = vpop.permute.xlu0 %823
        %v826 = vmul.f32 %v824, %v819
        %v827 = vsub.f32 1.0, %v640
        %829 = vset.pattern.permute.xlu0 32
        %830 = vperm.xlu0 %829, %v827
        %v831 = vpop.permute.xlu0 %830
        %v833 = vmul.f32 %v831, %v590
        %v834 = vadd.f32 %v826, %v833
        %835 = vst.msk [vmem:[%s510] sm:$0xff] %vm649, %v834
        %s836 = sand.u32 %s287, 1
        %s837 = scalar_lea.sflag [#allocation8], %s836
        %s838 = sand.u32 %s287, 1
        %s839 = smul.addr %s838, 8
        %s840 = scalar_lea.vmem [#allocation17], %s839
        // Predicated region
        $region96: #{tpu_custom_call.1} parent=59 // pred_check
          %p841 = pneg %p297
        $region97: #{tpu_custom_call.1} parent=59 // pred_check_branch
          %843 = sbr.rel (%p841) target = $region99
        $region98: #{tpu_custom_call.1} parent=59 // pred_region
          %s844 = sadd.s32 %s37, %s39
          %846 = vsyncadd %s837, 0
          %s847 = sadd.s32 %s844, %s38
          %s848 = smul.addr %s847, 8
          %s849 = scalar_lea.hbm %s10, %s848
          %s851 = sshll.u32 %s840, 4
          %s852 = int_to_ptr.vmem [resolvable:$true] %s851
          %s853 = sshll.u32 %s849, 4
          %s854 = int_to_ptr.hbm [resolvable:$true] %s853
          %856 = dma.vmem_to_hbm [thread:$0]  %s852, 128, %s854, %s837
        $region99: #{tpu_custom_call.1} parent=59 // pred_fallthru
          _
      $region60: #{tpu_custom_call.1} parent=5 // pred_fallthru
        _
      %p857 = scmp.le.s32.totalorder 2, %s27
      // Predicated region
      $region100: #{tpu_custom_call.1} parent=5 // pred_check
        %p858 = pneg %p857
      $region101: #{tpu_custom_call.1} parent=5 // pred_check_branch
        %860 = sbr.rel (%p858) target = $region103
      $region102: #{tpu_custom_call.1} parent=5 // pred_region
        %s861 = ssub.s32 %s27, 2
        // Predicated region
        $region104: #{tpu_custom_call.1} parent=102 // pred_check
          %p862 = pneg %p303
        $region105: #{tpu_custom_call.1} parent=102 // pred_check_branch
          %864 = sbr.rel (%p862) target = $region107
        $region106: #{tpu_custom_call.1} parent=102 // pred_region
          %s865 = sand.u32 %s288, 1
          %s866 = scalar_lea.sflag [#allocation8], %s865
          %s867 = sand.u32 %s288, 1
          %s868 = smul.addr %s867, 8
          %s869 = scalar_lea.vmem [#allocation17], %s868
          %871 = dma.done %s866, 128
        $region107: #{tpu_custom_call.1} parent=102 // pred_fallthru
          _
      $region103: #{tpu_custom_call.1} parent=5 // pred_fallthru
        _
    $region6: #{tpu_custom_call.1} parent=1 // loop_footer
      %s31 = sadd.s32 1, %s27
    $region7: #{tpu_custom_call.1} parent=1 // loop_footer_branch
      %26 = sbr.rel target = $region3
    $region8: #{tpu_custom_call.1} parent=1 // loop_exit
      _
    %872 = vsyncpa [#allocation7], 1
    %s873 = scalar_lea.sflag [#allocation7], 1
    %874 = vsyncpa %s873, 1
    %875 = vsyncpa [#allocation10], 1
    %s876 = scalar_lea.sflag [#allocation10], 1
    %877 = vsyncpa %s876, 1
    %878 = vsyncpa [#allocation13], 1
    %879 = vsyncpa [#allocation16], 1
    %880 = vsyncpa [#allocation8], 1
    %s881 = scalar_lea.sflag [#allocation8], 1
    %882 = vsyncpa %s881, 1

</llo_original>
